<compile_context>
chip_gen: v7x
topology: tpu7x:2x2x1
jax: 0.10.0
libtpu: 0.0.40
codegen_flags: <defaults>
</compile_context>

<pallas_src>
import jax
import jax.numpy as jnp
from jax.experimental import pallas as pl
from jax.experimental.pallas import tpu as pltpu


def _round_up(x, m):
    return (x + m - 1) // m * m


def _head_kernel(x_ref, pool_ref, w1_ref, w2_ref, wc1_ref, bc1_ref,
                 wc2_ref, bc2_ref, out_ref):
    """Pool + SE block + classifier MLP for one batch tile.

    x_ref   : (TB*HW, C)   bf16 feature rows, channels on lanes
    pool_ref: (TB, TB*HW)  bf16 banded averaging matrix (1/HW on the band)
    w1_ref  : (C, C//8)    bf16 SE fc1 weight (transposed, no bias)
    w2_ref  : (C//8, C)    bf16 SE fc2 weight (transposed, no bias)
    wc1_ref : (C, 256)     bf16 classifier Linear1 weight (transposed)
    bc1_ref : (1, 256)     f32  classifier Linear1 bias
    wc2_ref : (256, NCp)   bf16 classifier Linear2 weight (zero-padded cols)
    bc2_ref : (1, NCp)     f32  classifier Linear2 bias (zero-padded)
    out_ref : (TB, NCp)    f32  logits (lane-dense padded)
    """
    # nn.AdaptiveAvgPool2d(1) as an MXU contraction: (TB, TB*HW) @ (TB*HW, C)
    # -> (TB, C), bf16 inputs, f32 accumulation.  No f32 feature copy in VMEM.
    pooled = jnp.dot(pool_ref[...], x_ref[...],
                     preferred_element_type=jnp.float32)          # (TB, C) f32

    # SEBlock on (B, C, 1, 1): its internal avgpool is identity at 1x1 spatial.
    h = jnp.dot(pooled.astype(jnp.bfloat16), w1_ref[...],
                preferred_element_type=jnp.float32)
    h = jnp.maximum(h, 0.0)                                        # ReLU
    gate = jax.nn.sigmoid(jnp.dot(h.astype(jnp.bfloat16), w2_ref[...],
                                  preferred_element_type=jnp.float32))
    feat = pooled * gate                                           # x * y, flatten(1)

    # classifier: Dropout(eval=identity) -> Linear -> ReLU -> Dropout -> Linear
    z = jnp.dot(feat.astype(jnp.bfloat16), wc1_ref[...],
                preferred_element_type=jnp.float32) + bc1_ref[...]
    z = jnp.maximum(z, 0.0)
    out = jnp.dot(z.astype(jnp.bfloat16), wc2_ref[...],
                  preferred_element_type=jnp.float32) + bc2_ref[...]
    out_ref[...] = out.astype(out_ref.dtype)


def efficientnet_b2_se_head(features, params, *, tile_b=None,
                            vmem_limit_bytes=None):
    """features: (B, C, H, W) float32 backbone feature maps (NCHW)."""
    w1, w2, wc1, bc1, wc2, bc2 = params
    B, C, H, W = features.shape
    HW = H * W
    num_classes = wc2.shape[1]
    c_red = w1.shape[1]
    hidden = wc1.shape[1]

    # Lane-dense 2D layout: channels on lanes, (batch*spatial) rows.  Zero bf16
    # sublane padding because TB*HW is a multiple of 16 (TB is a multiple of 8
    # and this path keeps HW even in the test; at HW=49 use TB multiple of 16).
    x2d = jnp.transpose(features, (0, 2, 3, 1)).reshape(B * HW, C)
    x2d = x2d.astype(jnp.bfloat16)

    # Batch tile: multiple of 8; default gives >= 4 grid steps on large batches
    # (two per TensorCore on v7x) and caps at 64 rows of features per buffer.
    if tile_b is None:
        tile_b = max(8, min(64, _round_up(-(-B // 4), 8)))
    TB = max(8, _round_up(min(tile_b, _round_up(B, 8)), 8))
    B_pad = _round_up(B, TB)
    if B_pad != B:
        x2d = jnp.pad(x2d, ((0, (B_pad - B) * HW), (0, 0)))
    n_tiles = B_pad // TB

    # Banded averaging matrix for the MXU pool: pool[b, b*HW + s] = 1/HW.
    rows = jnp.arange(TB, dtype=jnp.int32)[:, None]
    cols = jnp.arange(TB * HW, dtype=jnp.int32)[None, :] // HW
    pool_mat = jnp.where(rows == cols, 1.0 / HW, 0.0).astype(jnp.bfloat16)

    # Lane-dense output: pad class dim to a multiple of 128 with zero columns.
    NC_pad = _round_up(num_classes, 128)

    # Weights in bf16 (native MXU, half the resident VMEM); biases stay f32.
    w1b = w1.astype(jnp.bfloat16)
    w2b = w2.astype(jnp.bfloat16)
    wc1b = wc1.astype(jnp.bfloat16)
    wc2b = jnp.pad(wc2, ((0, 0), (0, NC_pad - num_classes))).astype(jnp.bfloat16)
    bc1f = bc1.astype(jnp.float32).reshape(1, hidden)
    bc2f = jnp.pad(bc2.astype(jnp.float32).reshape(1, num_classes),
                   ((0, 0), (0, NC_pad - num_classes)))

    # VMEM budget derived from the actual tile footprint (double-buffered bf16
    # input + resident pool matrix/weights + double-buffered output + temps).
    weight_bytes = 2 * (w1b.size + w2b.size + wc1b.size + wc2b.size)
    bias_bytes = 4 * (bc1f.size + bc2f.size)
    if vmem_limit_bytes is None:
        x_bytes = 2 * TB * HW * C * 2            # double-buffered bf16 input
        pool_bytes = TB * TB * HW * 2
        out_bytes = 2 * TB * NC_pad * 4
        temp_bytes = 6 * TB * max(C, hidden, NC_pad) * 4
        vmem_limit_bytes = min(
            _round_up(x_bytes + pool_bytes + weight_bytes + bias_bytes
                      + out_bytes + temp_bytes + (4 << 20), 1 << 20),
            100 * 1024 * 1024)

    # Advisory cost estimate: this kernel is HBM-bound on the feature read.
    flops = int(2 * n_tiles * TB * (TB * HW * C + 2 * C * c_red
                                    + C * hidden + hidden * NC_pad))
    bytes_accessed = int(2 * x2d.size + 2 * pool_mat.size + weight_bytes
                         + bias_bytes + 4 * B_pad * NC_pad)
    cost = pl.CostEstimate(flops=flops, transcendentals=int(B_pad * C),
                           bytes_accessed=bytes_accessed)

    out = pl.pallas_call(
        _head_kernel,
        out_shape=jax.ShapeDtypeStruct((B_pad, NC_pad), jnp.float32),
        grid=(n_tiles,),
        in_specs=[
            # Batch-tiled feature rows: double-buffered DMA across grid steps.
            pl.BlockSpec((TB * HW, C), lambda i: (i, 0)),
            # Pool matrix + weights/biases: constant index_map -> VMEM-resident.
            pl.BlockSpec(pool_mat.shape, lambda i: (0, 0)),
            pl.BlockSpec(w1b.shape, lambda i: (0, 0)),
            pl.BlockSpec(w2b.shape, lambda i: (0, 0)),
            pl.BlockSpec(wc1b.shape, lambda i: (0, 0)),
            pl.BlockSpec(bc1f.shape, lambda i: (0, 0)),
            pl.BlockSpec(wc2b.shape, lambda i: (0, 0)),
            pl.BlockSpec(bc2f.shape, lambda i: (0, 0)),
        ],
        out_specs=pl.BlockSpec((TB, NC_pad), lambda i: (i, 0)),
        compiler_params=pltpu.CompilerParams(
            # Independent batch tiles -> shard across both v7x TensorCores.
            dimension_semantics=("parallel",),
            vmem_limit_bytes=vmem_limit_bytes,
        ),
        cost_estimate=cost,
    )(x2d, pool_mat, w1b, w2b, wc1b, bc1f, wc2b, bc2f)

    return out[:B, :num_classes]


def init_params(key, num_features, reduction, hidden, num_classes):
    """Deterministic synthetic parameter init (shapes match the PyTorch module)."""
    k1, k2, k3, k4, k5, k6 = jax.random.split(key, 6)
    c_red = num_features // reduction
    # SE block: Linear(C, C//r, bias=False), Linear(C//r, C, bias=False)
    w1 = jax.random.normal(k1, (num_features, c_red), jnp.float32) * 0.05
    w2 = jax.random.normal(k2, (c_red, num_features), jnp.float32) * 0.05
    # classifier: Linear(C, 256), Linear(256, num_classes)
    wc1 = jax.random.normal(k3, (num_features, hidden), jnp.float32) * 0.05
    bc1 = jax.random.normal(k4, (1, hidden), jnp.float32) * 0.01
    wc2 = jax.random.normal(k5, (hidden, num_classes), jnp.float32) * 0.05
    bc2 = jax.random.normal(k6, (1, num_classes), jnp.float32) * 0.01
    return (w1, w2, wc1, bc1, wc2, bc2)


def reference(features, params):
    """Pure-JAX f32 reference mirroring the PyTorch forward (eval mode)."""
    w1, w2, wc1, bc1, wc2, bc2 = params
    B, C, H, W = features.shape
    pooled = jnp.mean(features.reshape(B, C, H * W), axis=-1)
    gate = jax.nn.sigmoid(jnp.maximum(pooled @ w1, 0.0) @ w2)
    feat = pooled * gate
    z = jnp.maximum(feat @ wc1 + bc1, 0.0)
    return z @ wc2 + bc2


if __name__ == "__main__":
    # Small shapes consistent with the module (real B2: num_features=1408,
    # spatial ~7x7-9x9); scaled down here.  B=16 with tile_b=8 gives a 2-step
    # batch-tiled grid so the pipelined/parallel path is actually exercised.
    B, C, H, W = 16, 128, 8, 8          # num_features=128, spatial 8x8
    REDUCTION = 8                        # SEBlock(num_features, reduction=8)
    HIDDEN = 256                         # classifier hidden size (as in module)
    NUM_CLASSES = 3

    key = jax.random.PRNGKey(0)
    k_feat, k_par = jax.random.split(key)
    features = jax.random.normal(k_feat, (B, C, H, W), jnp.float32)
    params = init_params(k_par, C, REDUCTION, HIDDEN, NUM_CLASSES)

    out = efficientnet_b2_se_head(features, params, tile_b=8)
    out = jax.block_until_ready(out)

    ref = jax.block_until_ready(reference(features, params))
    assert out.shape == (B, NUM_CLASSES)
    # Features and weights are bf16 inside the kernel (MXU-native, halved HBM /
    # VMEM traffic); all accumulation is f32, so only quantization noise remains.
    assert jnp.allclose(out, ref, atol=2e-2, rtol=2e-2), "mismatch vs reference"

    print("KERNEL_OK")
</pallas_src>

<mosaic_0001>
module attributes {stable_mosaic.version = 11 : i64} {
  func.func @_head_kernel(%arg0: i32, %arg1: memref<512x128xbf16, #tpu.memory_space<vmem>>, %arg2: memref<8x512xbf16, #tpu.memory_space<vmem>>, %arg3: memref<128x16xbf16, #tpu.memory_space<vmem>>, %arg4: memref<16x128xbf16, #tpu.memory_space<vmem>>, %arg5: memref<128x256xbf16, #tpu.memory_space<vmem>>, %arg6: memref<1x256xf32, #tpu.memory_space<vmem>>, %arg7: memref<256x128xbf16, #tpu.memory_space<vmem>>, %arg8: memref<1x128xf32, #tpu.memory_space<vmem>>, %arg9: memref<8x128xf32, #tpu.memory_space<vmem>>) attributes {dimension_semantics = [#tpu.dimension_semantics<parallel>], iteration_bounds = array<i64: 2>, scalar_prefetch = 0 : i64, scratch_operands = 0 : i64, tpu.core_type = #tpu.core_type<tc>, window_params = [{transform_indices = @transform_0, window_bounds = array<i64: 512, 128>}, {pipeline_mode = #tpu.pipeline_mode<synchronous>, transform_indices = @transform_1, window_bounds = array<i64: 8, 512>}, {pipeline_mode = #tpu.pipeline_mode<synchronous>, transform_indices = @transform_2, window_bounds = array<i64: 128, 16>}, {pipeline_mode = #tpu.pipeline_mode<synchronous>, transform_indices = @transform_3, window_bounds = array<i64: 16, 128>}, {pipeline_mode = #tpu.pipeline_mode<synchronous>, transform_indices = @transform_4, window_bounds = array<i64: 128, 256>}, {pipeline_mode = #tpu.pipeline_mode<synchronous>, transform_indices = @transform_5, window_bounds = array<i64: 1, 256>}, {pipeline_mode = #tpu.pipeline_mode<synchronous>, transform_indices = @transform_6, window_bounds = array<i64: 256, 128>}, {pipeline_mode = #tpu.pipeline_mode<synchronous>, transform_indices = @transform_7, window_bounds = array<i64: 1, 128>}, {transform_indices = @transform_8, window_bounds = array<i64: 8, 128>}]} {
    %c0 = arith.constant 0 : index
    %c0_0 = arith.constant 0 : index
    %0 = vector.load %arg2[%c0, %c0_0] : memref<8x512xbf16, #tpu.memory_space<vmem>>, vector<8x512xbf16>
    %c0_1 = arith.constant 0 : index
    %c0_2 = arith.constant 0 : index
    %1 = vector.load %arg1[%c0_1, %c0_2] : memref<512x128xbf16, #tpu.memory_space<vmem>>, vector<512x128xbf16>
    %cst = arith.constant dense<0.000000e+00> : vector<8x128xf32>
    %2 = tpu.matmul %0, %1, %cst {dimension_numbers = #tpu.dot_dimension_numbers<[1], [0], [0], [1], [0, 0, 1, 1], [], []>} : vector<8x512xbf16>, vector<512x128xbf16>, vector<8x128xf32> -> vector<8x128xf32>
    %3 = arith.truncf %2 : vector<8x128xf32> to vector<8x128xbf16>
    %c0_3 = arith.constant 0 : index
    %c0_4 = arith.constant 0 : index
    %4 = vector.load %arg3[%c0_3, %c0_4] : memref<128x16xbf16, #tpu.memory_space<vmem>>, vector<128x16xbf16>
    %cst_5 = arith.constant dense<0.000000e+00> : vector<8x16xf32>
    %5 = tpu.matmul %3, %4, %cst_5 {dimension_numbers = #tpu.dot_dimension_numbers<[1], [0], [0], [1], [0, 0, 1, 1], [], []>} : vector<8x128xbf16>, vector<128x16xbf16>, vector<8x16xf32> -> vector<8x16xf32>
    %cst_6 = arith.constant 0.000000e+00 : f32
    %6 = vector.broadcast %cst_6 : f32 to vector<8x16xf32>
    %7 = arith.maximumf %5, %6 : vector<8x16xf32>
    %8 = arith.truncf %7 : vector<8x16xf32> to vector<8x16xbf16>
    %c0_7 = arith.constant 0 : index
    %c0_8 = arith.constant 0 : index
    %9 = vector.load %arg4[%c0_7, %c0_8] : memref<16x128xbf16, #tpu.memory_space<vmem>>, vector<16x128xbf16>
    %cst_9 = arith.constant dense<0.000000e+00> : vector<8x128xf32>
    %10 = tpu.matmul %8, %9, %cst_9 {dimension_numbers = #tpu.dot_dimension_numbers<[1], [0], [0], [1], [0, 0, 1, 1], [], []>} : vector<8x16xbf16>, vector<16x128xbf16>, vector<8x128xf32> -> vector<8x128xf32>
    %11 = arith.negf %10 : vector<8x128xf32>
    %12 = math.exp %11 : vector<8x128xf32>
    %cst_10 = arith.constant 1.000000e+00 : f32
    %13 = vector.broadcast %cst_10 : f32 to vector<8x128xf32>
    %14 = arith.addf %13, %12 : vector<8x128xf32>
    %15 = arith.divf %13, %14 : vector<8x128xf32>
    %16 = arith.mulf %2, %15 : vector<8x128xf32>
    %17 = arith.truncf %16 : vector<8x128xf32> to vector<8x128xbf16>
    %c0_11 = arith.constant 0 : index
    %c0_12 = arith.constant 0 : index
    %18 = vector.load %arg5[%c0_11, %c0_12] : memref<128x256xbf16, #tpu.memory_space<vmem>>, vector<128x256xbf16>
    %cst_13 = arith.constant dense<0.000000e+00> : vector<8x256xf32>
    %19 = tpu.matmul %17, %18, %cst_13 {dimension_numbers = #tpu.dot_dimension_numbers<[1], [0], [0], [1], [0, 0, 1, 1], [], []>} : vector<8x128xbf16>, vector<128x256xbf16>, vector<8x256xf32> -> vector<8x256xf32>
    %c0_14 = arith.constant 0 : index
    %c0_15 = arith.constant 0 : index
    %20 = vector.load %arg6[%c0_14, %c0_15] : memref<1x256xf32, #tpu.memory_space<vmem>>, vector<1x256xf32>
    %21 = vector.broadcast %20 : vector<1x256xf32> to vector<8x256xf32>
    %22 = arith.addf %19, %21 : vector<8x256xf32>
    %cst_16 = arith.constant 0.000000e+00 : f32
    %23 = vector.broadcast %cst_16 : f32 to vector<8x256xf32>
    %24 = arith.maximumf %22, %23 : vector<8x256xf32>
    %25 = arith.truncf %24 : vector<8x256xf32> to vector<8x256xbf16>
    %c0_17 = arith.constant 0 : index
    %c0_18 = arith.constant 0 : index
    %26 = vector.load %arg7[%c0_17, %c0_18] : memref<256x128xbf16, #tpu.memory_space<vmem>>, vector<256x128xbf16>
    %cst_19 = arith.constant dense<0.000000e+00> : vector<8x128xf32>
    %27 = tpu.matmul %25, %26, %cst_19 {dimension_numbers = #tpu.dot_dimension_numbers<[1], [0], [0], [1], [0, 0, 1, 1], [], []>} : vector<8x256xbf16>, vector<256x128xbf16>, vector<8x128xf32> -> vector<8x128xf32>
    %c0_20 = arith.constant 0 : index
    %c0_21 = arith.constant 0 : index
    %28 = vector.load %arg8[%c0_20, %c0_21] : memref<1x128xf32, #tpu.memory_space<vmem>>, vector<1x128xf32>
    %29 = vector.broadcast %28 : vector<1x128xf32> to vector<8x128xf32>
    %30 = arith.addf %27, %29 : vector<8x128xf32>
    %c0_22 = arith.constant 0 : index
    %c0_23 = arith.constant 0 : index
    %31 = vector.load %arg9[%c0_22, %c0_23] : memref<8x128xf32, #tpu.memory_space<vmem>>, vector<8x128xf32>
    tpu.vector_store %arg9[%c0_22, %c0_23], %30 {strides = array<i32>} : memref<8x128xf32, #tpu.memory_space<vmem>>, vector<8x128xf32>,
    return
  }
  func.func @transform_0(%arg0: i32) -> (i32, i32) {
    %c0_i32 = arith.constant 0 : i32
    %c0_i32_0 = arith.constant 0 : i32
    return %arg0, %c0_i32 : i32, i32
  }
  func.func @transform_1(%arg0: i32) -> (i32, i32) {
    %c0_i32 = arith.constant 0 : i32
    %c0_i32_0 = arith.constant 0 : i32
    %c0_i32_1 = arith.constant 0 : i32
    return %c0_i32, %c0_i32_0 : i32, i32
  }
  func.func @transform_2(%arg0: i32) -> (i32, i32) {
    %c0_i32 = arith.constant 0 : i32
    %c0_i32_0 = arith.constant 0 : i32
    %c0_i32_1 = arith.constant 0 : i32
    return %c0_i32, %c0_i32_0 : i32, i32
  }
  func.func @transform_3(%arg0: i32) -> (i32, i32) {
    %c0_i32 = arith.constant 0 : i32
    %c0_i32_0 = arith.constant 0 : i32
    %c0_i32_1 = arith.constant 0 : i32
    return %c0_i32, %c0_i32_0 : i32, i32
  }
  func.func @transform_4(%arg0: i32) -> (i32, i32) {
    %c0_i32 = arith.constant 0 : i32
    %c0_i32_0 = arith.constant 0 : i32
    %c0_i32_1 = arith.constant 0 : i32
    return %c0_i32, %c0_i32_0 : i32, i32
  }
  func.func @transform_5(%arg0: i32) -> (i32, i32) {
    %c0_i32 = arith.constant 0 : i32
    %c0_i32_0 = arith.constant 0 : i32
    %c0_i32_1 = arith.constant 0 : i32
    return %c0_i32, %c0_i32_0 : i32, i32
  }
  func.func @transform_6(%arg0: i32) -> (i32, i32) {
    %c0_i32 = arith.constant 0 : i32
    %c0_i32_0 = arith.constant 0 : i32
    %c0_i32_1 = arith.constant 0 : i32
    return %c0_i32, %c0_i32_0 : i32, i32
  }
  func.func @transform_7(%arg0: i32) -> (i32, i32) {
    %c0_i32 = arith.constant 0 : i32
    %c0_i32_0 = arith.constant 0 : i32
    %c0_i32_1 = arith.constant 0 : i32
    return %c0_i32, %c0_i32_0 : i32, i32
  }
  func.func @transform_8(%arg0: i32) -> (i32, i32) {
    %c0_i32 = arith.constant 0 : i32
    %c0_i32_0 = arith.constant 0 : i32
    return %arg0, %c0_i32 : i32, i32
  }
}

</mosaic_0001>

<llo_original>
// kernel: tpu_custom_call.1
$region0: #{tpu_custom_call.1}
  #allocation0 [shape = 'u32[]', space=smem, size = 0x4, offset = 0x4, fixed_abs, tag = 'smem constant byte address 0x4 - core index']
  #allocation1 [shape = 'u32[144,128]{1,0:T(1,128)}', space=vmem, size = 0x12000, scoped, tag = 'internal scratch']
  %s0 = inlined_call_operand.hbm [shape: bf16[1024,128], index: 0, kind: input, shape index: {}]
  %s1 = inlined_call_operand.vmem [shape: bf16[8,512], index: 1, kind: input, shape index: {}]
  %s2 = inlined_call_operand.vmem [shape: bf16[128,16], index: 2, kind: input, shape index: {}]
  %s3 = inlined_call_operand.vmem [shape: bf16[16,128], index: 3, kind: input, shape index: {}]
  %s4 = inlined_call_operand.hbm [shape: bf16[128,256], index: 4, kind: input, shape index: {}]
  %s5 = inlined_call_operand.vmem [shape: f32[1,256], index: 5, kind: input, shape index: {}]
  %s6 = inlined_call_operand.hbm [shape: bf16[256,128], index: 6, kind: input, shape index: {}]
  %s7 = inlined_call_operand.vmem [shape: f32[1,128], index: 7, kind: input, shape index: {}]
  %s8 = inlined_call_operand.hbm [shape: f32[16,128], index: 8, kind: output, shape index: {}]
  %s9 = sld [smem:[#allocation0]]
  $region77: #{tpu_custom_call.1} parent=0
    _
  %s11 = ssub.s32 1, %s9
  %s12 = scalar_select 0, %s11, %s9
  $region1: #{tpu_custom_call.1} parent=0
    #allocation2 [shape = 'u8[262144]{0}', space=vmem, size = 0x40000, scoped, tag = 'input window, operand 0']
    #allocation3 [shape = 's32[2]{0}', space=sflag, size = 0x8, scoped, tag = 'scoped memory for tpu_custom_call.1']
    #allocation4 [shape = 's32[2]{0}', space=sflag, size = 0x8, scoped, tag = 'scoped memory for tpu_custom_call.1']
    #allocation5 [shape = 'u8[65536]{0}', space=vmem, size = 0x10000, scoped, tag = 'input window, operand 4, single buffered']
    #allocation6 [shape = 's32[1]{0}', space=sflag, size = 0x4, scoped, tag = 'scoped memory for tpu_custom_call.1']
    #allocation7 [shape = 'u8[65536]{0}', space=vmem, size = 0x10000, scoped, tag = 'input window, operand 6, single buffered']
    #allocation8 [shape = 'u8[8192]{0}', space=vmem, size = 0x2000, scoped, tag = 'output window, operand 0']
    %13 = vsyncpa [#allocation3], 0
    %s14 = scalar_lea.sflag [#allocation3], 1
    %15 = vsyncpa %s14, 0
    %16 = vsyncpa [#allocation6], 0
    %17 = vsyncpa [#allocation4], 0
    %s18 = scalar_lea.sflag [#allocation4], 1
    %19 = vsyncpa %s18, 0
    loop: start=0, step=1, limit=4
    $region2: #{tpu_custom_call.1} parent=1 // loop_pre_header
      _
    $region3: #{tpu_custom_call.1} parent=1 // loop_header
      %s21 = sphi 0, %s25
      %p22 = scmp.ge.s32.totalorder %s21, 4
      %s31 = sphi 0, %s33
      %s34 = sphi 0, %s31
      %s35 = sphi 0, %s34
      %s51 = sphi 0, %s35
      %s55 = sphi 0, %s55
      %s57 = sphi 0, %s55
      %s58 = sphi 0, %s57
      %s72 = sphi 0, %s58
      %s76 = sphi 0, %s76
      %s78 = sphi 0, %s76
      %s79 = sphi 0, %s78
      %s93 = sphi 0, %s79
      %s97 = sphi 0, %s97
      %s99 = sphi 0, %s97
      %s100 = sphi 0, %s99
      %s114 = sphi 0, %s100
      %s118 = sphi 0, %s118
      %s120 = sphi 0, %s118
      %s121 = sphi 0, %s120
      %s135 = sphi 0, %s121
      %s139 = sphi 0, %s139
      %s141 = sphi 0, %s139
      %s142 = sphi 0, %s141
      %s156 = sphi 0, %s142
      %s160 = sphi 0, %s160
      %s162 = sphi 0, %s160
      %s163 = sphi 0, %s162
      %s177 = sphi 0, %s163
      %s181 = sphi 0, %s181
      %s183 = sphi 0, %s181
      %s184 = sphi 0, %s183
      %s198 = sphi 0, %s184
      %s204 = sphi 0, %s206
      %s207 = sphi 0, %s204
      %s208 = sphi 0, %s207
      %s224 = sphi 0, %s208
    $region4: #{tpu_custom_call.1} parent=1 // loop_header_branch
      %24 = sbr.rel (%p22) target = $region8
    $region5: #{tpu_custom_call.1} parent=1 // loop_body
      %s26 = ssub.s32 %s21, 1
      %s27 = ssub.s32 %s21, 2
      %s28 = sadd.s32 %s21, 1
      %s29 = ssub.s32 %s21, %s28
      %p30 = scmp.eq.s32.totalorder %s29, 0
      %s32 = sadd.s32 %s31, 1
      %s33 = scalar_select %p30, %s31, %s32
      %p36 = pneg %p30
      %p37 = scmp.eq.s32.totalorder %s21, 1
      %p38 = por %p36, %p37
      %p39 = scmp.ne.s32.totalorder %s31, %s34
      %p40 = scmp.eq.s32.totalorder %s21, 0
      %p41 = por %p39, %p40
      %p42 = scmp.ne.s32.totalorder %s31, %s34
      %p43 = scmp.eq.s32.totalorder %s26, 1
      %p44 = por %p42, %p43
      %p45 = scmp.ne.s32.totalorder %s34, %s35
      %p46 = scmp.eq.s32.totalorder %s26, 0
      %p47 = por %p45, %p46
      %p48 = scmp.ne.s32.totalorder %s34, %s35
      %p49 = scmp.eq.s32.totalorder %s27, 1
      %p50 = por %p48, %p49
      %p52 = scmp.ne.s32.totalorder %s35, %s51
      %p53 = scmp.eq.s32.totalorder %s27, 0
      %p54 = por %p52, %p53
      %s56 = sadd.s32 %s55, 1
      %p59 = scmp.eq.s32.totalorder %s21, 1
      %p60 = scmp.ne.s32.totalorder %s55, %s57
      %p61 = scmp.eq.s32.totalorder %s21, 0
      %p62 = por %p60, %p61
      %p63 = scmp.ne.s32.totalorder %s55, %s57
      %p64 = scmp.eq.s32.totalorder %s26, 1
      %p65 = por %p63, %p64
      %p66 = scmp.ne.s32.totalorder %s57, %s58
      %p67 = scmp.eq.s32.totalorder %s26, 0
      %p68 = por %p66, %p67
      %p69 = scmp.ne.s32.totalorder %s57, %s58
      %p70 = scmp.eq.s32.totalorder %s27, 1
      %p71 = por %p69, %p70
      %p73 = scmp.ne.s32.totalorder %s58, %s72
      %p74 = scmp.eq.s32.totalorder %s27, 0
      %p75 = por %p73, %p74
      %s77 = sadd.s32 %s76, 1
      %p80 = scmp.eq.s32.totalorder %s21, 1
      %p81 = scmp.ne.s32.totalorder %s76, %s78
      %p82 = scmp.eq.s32.totalorder %s21, 0
      %p83 = por %p81, %p82
      %p84 = scmp.ne.s32.totalorder %s76, %s78
      %p85 = scmp.eq.s32.totalorder %s26, 1
      %p86 = por %p84, %p85
      %p87 = scmp.ne.s32.totalorder %s78, %s79
      %p88 = scmp.eq.s32.totalorder %s26, 0
      %p89 = por %p87, %p88
      %p90 = scmp.ne.s32.totalorder %s78, %s79
      %p91 = scmp.eq.s32.totalorder %s27, 1
      %p92 = por %p90, %p91
      %p94 = scmp.ne.s32.totalorder %s79, %s93
      %p95 = scmp.eq.s32.totalorder %s27, 0
      %p96 = por %p94, %p95
      %s98 = sadd.s32 %s97, 1
      %p101 = scmp.eq.s32.totalorder %s21, 1
      %p102 = scmp.ne.s32.totalorder %s97, %s99
      %p103 = scmp.eq.s32.totalorder %s21, 0
      %p104 = por %p102, %p103
      %p105 = scmp.ne.s32.totalorder %s97, %s99
      %p106 = scmp.eq.s32.totalorder %s26, 1
      %p107 = por %p105, %p106
      %p108 = scmp.ne.s32.totalorder %s99, %s100
      %p109 = scmp.eq.s32.totalorder %s26, 0
      %p110 = por %p108, %p109
      %p111 = scmp.ne.s32.totalorder %s99, %s100
      %p112 = scmp.eq.s32.totalorder %s27, 1
      %p113 = por %p111, %p112
      %p115 = scmp.ne.s32.totalorder %s100, %s114
      %p116 = scmp.eq.s32.totalorder %s27, 0
      %p117 = por %p115, %p116
      %s119 = sadd.s32 %s118, 1
      %p122 = scmp.eq.s32.totalorder %s21, 1
      %p123 = scmp.ne.s32.totalorder %s118, %s120
      %p124 = scmp.eq.s32.totalorder %s21, 0
      %p125 = por %p123, %p124
      %p126 = scmp.ne.s32.totalorder %s118, %s120
      %p127 = scmp.eq.s32.totalorder %s26, 1
      %p128 = por %p126, %p127
      %p129 = scmp.ne.s32.totalorder %s120, %s121
      %p130 = scmp.eq.s32.totalorder %s26, 0
      %p131 = por %p129, %p130
      %p132 = scmp.ne.s32.totalorder %s120, %s121
      %p133 = scmp.eq.s32.totalorder %s27, 1
      %p134 = por %p132, %p133
      %p136 = scmp.ne.s32.totalorder %s121, %s135
      %p137 = scmp.eq.s32.totalorder %s27, 0
      %p138 = por %p136, %p137
      %s140 = sadd.s32 %s139, 1
      %p143 = scmp.eq.s32.totalorder %s21, 1
      %p144 = scmp.ne.s32.totalorder %s139, %s141
      %p145 = scmp.eq.s32.totalorder %s21, 0
      %p146 = por %p144, %p145
      %p147 = scmp.ne.s32.totalorder %s139, %s141
      %p148 = scmp.eq.s32.totalorder %s26, 1
      %p149 = por %p147, %p148
      %p150 = scmp.ne.s32.totalorder %s141, %s142
      %p151 = scmp.eq.s32.totalorder %s26, 0
      %p152 = por %p150, %p151
      %p153 = scmp.ne.s32.totalorder %s141, %s142
      %p154 = scmp.eq.s32.totalorder %s27, 1
      %p155 = por %p153, %p154
      %p157 = scmp.ne.s32.totalorder %s142, %s156
      %p158 = scmp.eq.s32.totalorder %s27, 0
      %p159 = por %p157, %p158
      %s161 = sadd.s32 %s160, 1
      %p164 = scmp.eq.s32.totalorder %s21, 1
      %p165 = scmp.ne.s32.totalorder %s160, %s162
      %p166 = scmp.eq.s32.totalorder %s21, 0
      %p167 = por %p165, %p166
      %p168 = scmp.ne.s32.totalorder %s160, %s162
      %p169 = scmp.eq.s32.totalorder %s26, 1
      %p170 = por %p168, %p169
      %p171 = scmp.ne.s32.totalorder %s162, %s163
      %p172 = scmp.eq.s32.totalorder %s26, 0
      %p173 = por %p171, %p172
      %p174 = scmp.ne.s32.totalorder %s162, %s163
      %p175 = scmp.eq.s32.totalorder %s27, 1
      %p176 = por %p174, %p175
      %p178 = scmp.ne.s32.totalorder %s163, %s177
      %p179 = scmp.eq.s32.totalorder %s27, 0
      %p180 = por %p178, %p179
      %s182 = sadd.s32 %s181, 1
      %p185 = scmp.eq.s32.totalorder %s21, 1
      %p186 = scmp.ne.s32.totalorder %s181, %s183
      %p187 = scmp.eq.s32.totalorder %s21, 0
      %p188 = por %p186, %p187
      %p189 = scmp.ne.s32.totalorder %s181, %s183
      %p190 = scmp.eq.s32.totalorder %s26, 1
      %p191 = por %p189, %p190
      %p192 = scmp.ne.s32.totalorder %s183, %s184
      %p193 = scmp.eq.s32.totalorder %s26, 0
      %p194 = por %p192, %p193
      %p195 = scmp.ne.s32.totalorder %s183, %s184
      %p196 = scmp.eq.s32.totalorder %s27, 1
      %p197 = por %p195, %p196
      %p199 = scmp.ne.s32.totalorder %s184, %s198
      %p200 = scmp.eq.s32.totalorder %s27, 0
      %p201 = por %p199, %p200
      %s202 = ssub.s32 %s21, %s28
      %p203 = scmp.eq.s32.totalorder %s202, 0
      %s205 = sadd.s32 %s204, 1
      %s206 = scalar_select %p203, %s204, %s205
      %p209 = pneg %p203
      %p210 = scmp.eq.s32.totalorder %s21, 1
      %p211 = por %p209, %p210
      %p212 = scmp.ne.s32.totalorder %s204, %s207
      %p213 = scmp.eq.s32.totalorder %s21, 0
      %p214 = por %p212, %p213
      %p215 = scmp.ne.s32.totalorder %s204, %s207
      %p216 = scmp.eq.s32.totalorder %s26, 1
      %p217 = por %p215, %p216
      %p218 = scmp.ne.s32.totalorder %s207, %s208
      %p219 = scmp.eq.s32.totalorder %s26, 0
      %p220 = por %p218, %p219
      %p221 = scmp.ne.s32.totalorder %s207, %s208
      %p222 = scmp.eq.s32.totalorder %s27, 1
      %p223 = por %p221, %p222
      %p225 = scmp.ne.s32.totalorder %s208, %s224
      %p226 = scmp.eq.s32.totalorder %s27, 0
      %p227 = por %p225, %p226
      %p228 = scmp.le.s32.totalorder 1, %s21
      %p229 = scmp.lt.s32.totalorder %s21, 3
      %p230 = pnand %p228, %p229
      %p231 = pneg %p230
      // Predicated region
      $region9: #{tpu_custom_call.1} parent=5 // pred_check
        _
      $region10: #{tpu_custom_call.1} parent=5 // pred_check_branch
        %233 = sbr.rel (%p230) target = $region12
      $region11: #{tpu_custom_call.1} parent=5 // pred_region
        %s234 = ssub.s32 %s21, 1
        // Predicated region
        $region13: #{tpu_custom_call.1} parent=11 // pred_check
          %p235 = pneg %p68
        $region14: #{tpu_custom_call.1} parent=11 // pred_check_branch
          %237 = sbr.rel (%p235) target = $region16
        $region15: #{tpu_custom_call.1} parent=11 // pred_region
          _
        $region16: #{tpu_custom_call.1} parent=11 // pred_fallthru
          _
        // Predicated region
        $region17: #{tpu_custom_call.1} parent=11 // pred_check
          %p238 = pneg %p89
        $region18: #{tpu_custom_call.1} parent=11 // pred_check_branch
          %240 = sbr.rel (%p238) target = $region20
        $region19: #{tpu_custom_call.1} parent=11 // pred_region
          _
        $region20: #{tpu_custom_call.1} parent=11 // pred_fallthru
          _
        // Predicated region
        $region21: #{tpu_custom_call.1} parent=11 // pred_check
          %p241 = pneg %p110
        $region22: #{tpu_custom_call.1} parent=11 // pred_check_branch
          %243 = sbr.rel (%p241) target = $region24
        $region23: #{tpu_custom_call.1} parent=11 // pred_region
          _
        $region24: #{tpu_custom_call.1} parent=11 // pred_fallthru
          _
        // Predicated region
        $region25: #{tpu_custom_call.1} parent=11 // pred_check
          %p244 = pneg %p131
        $region26: #{tpu_custom_call.1} parent=11 // pred_check_branch
          %246 = sbr.rel (%p244) target = $region28
        $region27: #{tpu_custom_call.1} parent=11 // pred_region
          %s248 = ssub.s32 2048, 2048
          %249 = vsyncadd [#allocation6], %s248
          %s250 = sshll.u32 [#allocation5], 4
          %s251 = int_to_ptr.vmem [resolvable:$true] %s250
          %256 = dma.hbm_to_vmem [thread:$0]  %s4, 2048, %s251, [#allocation6], 128, 128, 8
        $region28: #{tpu_custom_call.1} parent=11 // pred_fallthru
          _
        // Predicated region
        $region29: #{tpu_custom_call.1} parent=11 // pred_check
          %p257 = pneg %p152
        $region30: #{tpu_custom_call.1} parent=11 // pred_check_branch
          %259 = sbr.rel (%p257) target = $region32
        $region31: #{tpu_custom_call.1} parent=11 // pred_region
          _
        $region32: #{tpu_custom_call.1} parent=11 // pred_fallthru
          _
        // Predicated region
        $region33: #{tpu_custom_call.1} parent=11 // pred_check
          %p260 = pneg %p173
        $region34: #{tpu_custom_call.1} parent=11 // pred_check_branch
          %262 = sbr.rel (%p260) target = $region36
        $region35: #{tpu_custom_call.1} parent=11 // pred_region
          %s264 = ssub.s32 2048, 2048
          %265 = vsyncadd [#allocation6], %s264
          %s266 = sshll.u32 [#allocation7], 4
          %s267 = int_to_ptr.vmem [resolvable:$true] %s266
          %272 = dma.hbm_to_vmem [thread:$0]  %s6, 2048, %s267, [#allocation6], 64, 64, 4
        $region36: #{tpu_custom_call.1} parent=11 // pred_fallthru
          _
        // Predicated region
        $region37: #{tpu_custom_call.1} parent=11 // pred_check
          %p273 = pneg %p194
        $region38: #{tpu_custom_call.1} parent=11 // pred_check_branch
          %275 = sbr.rel (%p273) target = $region40
        $region39: #{tpu_custom_call.1} parent=11 // pred_region
          _
        $region40: #{tpu_custom_call.1} parent=11 // pred_fallthru
          _
      $region12: #{tpu_custom_call.1} parent=5 // pred_fallthru
        _
      %p276 = scmp.lt.s32.totalorder %s21, 2
      // Predicated region
      $region41: #{tpu_custom_call.1} parent=5 // pred_check
        %p277 = pneg %p276
      $region42: #{tpu_custom_call.1} parent=5 // pred_check_branch
        %279 = sbr.rel (%p277) target = $region44
      $region43: #{tpu_custom_call.1} parent=5 // pred_region
        // Predicated region
        $region45: #{tpu_custom_call.1} parent=43 // pred_check
          %p280 = pneg %p41
        $region46: #{tpu_custom_call.1} parent=43 // pred_check_branch
          %282 = sbr.rel (%p280) target = $region48
        $region47: #{tpu_custom_call.1} parent=43 // pred_region
          %s283 = sand.u32 %s31, 1
          %s284 = scalar_lea.sflag [#allocation3], %s283
          %s285 = sand.u32 %s31, 1
          %s286 = smul.addr %s285, 256
          %s287 = scalar_lea.vmem [#allocation2], %s286
          %s288 = smul.u32 64, %s21
          %s290 = ssub.s32 4096, 4096
          %291 = vsyncadd %s284, %s290
          %s292 = smul.addr %s288, 64
          %s293 = scalar_lea.hbm %s0, %s292
          %s294 = sshll.u32 %s287, 4
          %s295 = int_to_ptr.vmem [resolvable:$true] %s294
          %300 = dma.hbm_to_vmem [thread:$0]  %s293, 4096, %s295, %s284, 64, 64, 4
        $region48: #{tpu_custom_call.1} parent=43 // pred_fallthru
          _
      $region44: #{tpu_custom_call.1} parent=5 // pred_fallthru
        _
      %p301 = scmp.le.s32.totalorder 1, %s21
      %p302 = scmp.lt.s32.totalorder %s21, 3
      %p303 = pnand %p301, %p302
      %p304 = pneg %p303
      // Predicated region
      $region49: #{tpu_custom_call.1} parent=5 // pred_check
        _
      $region50: #{tpu_custom_call.1} parent=5 // pred_check_branch
        %306 = sbr.rel (%p303) target = $region52
      $region51: #{tpu_custom_call.1} parent=5 // pred_region
        %s307 = ssub.s32 %s21, 1
        %s308 = sand.u32 %s34, 1
        %s309 = scalar_lea.sflag [#allocation3], %s308
        %s310 = sand.u32 %s34, 1
        %s311 = smul.addr %s310, 256
        %s312 = scalar_lea.vmem [#allocation2], %s311
        // Predicated region
        $region53: #{tpu_custom_call.1} parent=51 // pred_check
          %p313 = pneg %p47
        $region54: #{tpu_custom_call.1} parent=51 // pred_check_branch
          %315 = sbr.rel (%p313) target = $region56
        $region55: #{tpu_custom_call.1} parent=51 // pred_region
          %316 = dma.done %s309, 4096
        $region56: #{tpu_custom_call.1} parent=51 // pred_fallthru
          _
        // Predicated region
        $region57: #{tpu_custom_call.1} parent=51 // pred_check
          %p317 = pneg %p131
        $region58: #{tpu_custom_call.1} parent=51 // pred_check_branch
          %319 = sbr.rel (%p317) target = $region60
        $region59: #{tpu_custom_call.1} parent=51 // pred_region
          %320 = dma.done [#allocation6], 2048
        $region60: #{tpu_custom_call.1} parent=51 // pred_fallthru
          _
        // Predicated region
        $region61: #{tpu_custom_call.1} parent=51 // pred_check
          %p321 = pneg %p173
        $region62: #{tpu_custom_call.1} parent=51 // pred_check_branch
          %323 = sbr.rel (%p321) target = $region64
        $region63: #{tpu_custom_call.1} parent=51 // pred_region
          %324 = dma.done [#allocation6], 2048
        $region64: #{tpu_custom_call.1} parent=51 // pred_fallthru
          _
        %s325 = sand.u32 %s34, 1
        %s326 = scalar_lea.sflag [#allocation3], %s325
        %s327 = sand.u32 %s34, 1
        %s328 = smul.addr %s327, 256
        %s329 = scalar_lea.vmem [#allocation2], %s328
        %p330 = pneg %p47
        %p331 = pneg %p44
        %p332 = pneg %p68
        %p333 = pneg %p65
        %p334 = pneg %p89
        %p335 = pneg %p86
        %p336 = pneg %p110
        %p337 = pneg %p107
        %p338 = pneg %p131
        %p339 = pneg %p128
        %p340 = pneg %p152
        %p341 = pneg %p149
        %p342 = pneg %p173
        %p343 = pneg %p170
        %p344 = pneg %p194
        %p345 = pneg %p191
        %p346 = pneg %p220
        %p347 = pneg %p217
        %s348 = sand.u32 %s207, 1
        %s349 = scalar_lea.sflag [#allocation4], %s348
        %s350 = sand.u32 %s207, 1
        %s351 = smul.addr %s350, 8
        %s352 = scalar_lea.vmem [#allocation8], %s351
        %s353 = smul.u32 64, %s26
        %v355 = vld [vmem:[%s1] sm:$0xff]
        %v356 = vld [vmem:[%s1 + $0x8] sm:$0xff]
        %v357 = vld [vmem:[%s312] sm:$0xf]
        %v358 = vld [vmem:[%s312 + $0x4] sm:$0xf]
        %v359 = vld [vmem:[%s312 + $0x8] sm:$0xf]
        %v360 = vld [vmem:[%s312 + $0xc] sm:$0xf]
        %v361 = vld [vmem:[%s312 + $0x10] sm:$0xf]
        %v362 = vld [vmem:[%s312 + $0x14] sm:$0xf]
        %v363 = vld [vmem:[%s312 + $0x18] sm:$0xf]
        %v364 = vld [vmem:[%s312 + $0x1c] sm:$0xf]
        %v365 = vld [vmem:[%s312 + $0x20] sm:$0xf]
        %v366 = vld [vmem:[%s312 + $0x24] sm:$0xf]
        %v367 = vld [vmem:[%s312 + $0x28] sm:$0xf]
        %v368 = vld [vmem:[%s312 + $0x2c] sm:$0xf]
        %v369 = vld [vmem:[%s312 + $0x30] sm:$0xf]
        %v370 = vld [vmem:[%s312 + $0x34] sm:$0xf]
        %v371 = vld [vmem:[%s312 + $0x38] sm:$0xf]
        %v372 = vld [vmem:[%s312 + $0x3c] sm:$0xf]
        %v373 = vld [vmem:[%s312 + $0x40] sm:$0xf]
        %v374 = vld [vmem:[%s312 + $0x44] sm:$0xf]
        %v375 = vld [vmem:[%s312 + $0x48] sm:$0xf]
        %v376 = vld [vmem:[%s312 + $0x4c] sm:$0xf]
        %v377 = vld [vmem:[%s312 + $0x50] sm:$0xf]
        %v378 = vld [vmem:[%s312 + $0x54] sm:$0xf]
        %v379 = vld [vmem:[%s312 + $0x58] sm:$0xf]
        %v380 = vld [vmem:[%s312 + $0x5c] sm:$0xf]
        %v381 = vld [vmem:[%s312 + $0x60] sm:$0xf]
        %v382 = vld [vmem:[%s312 + $0x64] sm:$0xf]
        %v383 = vld [vmem:[%s312 + $0x68] sm:$0xf]
        %v384 = vld [vmem:[%s312 + $0x6c] sm:$0xf]
        %v385 = vld [vmem:[%s312 + $0x70] sm:$0xf]
        %v386 = vld [vmem:[%s312 + $0x74] sm:$0xf]
        %v387 = vld [vmem:[%s312 + $0x78] sm:$0xf]
        %v388 = vld [vmem:[%s312 + $0x7c] sm:$0xf]
        %v389 = vld [vmem:[%s312 + $0x80] sm:$0xf]
        %v390 = vld [vmem:[%s312 + $0x84] sm:$0xf]
        %v391 = vld [vmem:[%s312 + $0x88] sm:$0xf]
        %v392 = vld [vmem:[%s312 + $0x8c] sm:$0xf]
        %v393 = vld [vmem:[%s312 + $0x90] sm:$0xf]
        %v394 = vld [vmem:[%s312 + $0x94] sm:$0xf]
        %v395 = vld [vmem:[%s312 + $0x98] sm:$0xf]
        %v396 = vld [vmem:[%s312 + $0x9c] sm:$0xf]
        %v397 = vld [vmem:[%s312 + $0xa0] sm:$0xf]
        %v398 = vld [vmem:[%s312 + $0xa4] sm:$0xf]
        %v399 = vld [vmem:[%s312 + $0xa8] sm:$0xf]
        %v400 = vld [vmem:[%s312 + $0xac] sm:$0xf]
        %v401 = vld [vmem:[%s312 + $0xb0] sm:$0xf]
        %v402 = vld [vmem:[%s312 + $0xb4] sm:$0xf]
        %v403 = vld [vmem:[%s312 + $0xb8] sm:$0xf]
        %v404 = vld [vmem:[%s312 + $0xbc] sm:$0xf]
        %v405 = vld [vmem:[%s312 + $0xc0] sm:$0xf]
        %v406 = vld [vmem:[%s312 + $0xc4] sm:$0xf]
        %v407 = vld [vmem:[%s312 + $0xc8] sm:$0xf]
        %v408 = vld [vmem:[%s312 + $0xcc] sm:$0xf]
        %v409 = vld [vmem:[%s312 + $0xd0] sm:$0xf]
        %v410 = vld [vmem:[%s312 + $0xd4] sm:$0xf]
        %v411 = vld [vmem:[%s312 + $0xd8] sm:$0xf]
        %v412 = vld [vmem:[%s312 + $0xdc] sm:$0xf]
        %v413 = vld [vmem:[%s312 + $0xe0] sm:$0xf]
        %v414 = vld [vmem:[%s312 + $0xe4] sm:$0xf]
        %v415 = vld [vmem:[%s312 + $0xe8] sm:$0xf]
        %v416 = vld [vmem:[%s312 + $0xec] sm:$0xf]
        %v417 = vld [vmem:[%s312 + $0xf0] sm:$0xf]
        %v418 = vld [vmem:[%s312 + $0xf4] sm:$0xf]
        %v419 = vld [vmem:[%s312 + $0xf8] sm:$0xf]
        %v420 = vld [vmem:[%s312 + $0xfc] sm:$0xf]
        %v423 = vunpack.c.l.b16 %v355
        %v424 = vunpack.c.h.b16 %v355
        %v425 = vunpack.c.l.b16 %v356
        %v426 = vunpack.c.h.b16 %v356
        %v427 = vpack.c.b16 %v423, %v423
        %v428 = vpack.c.b16 %v424, %v424
        %v429 = vpack.c.b16 %v425, %v425
        %v430 = vpack.c.b16 %v426, %v426
        %v499 = vunpack.c.l.b16 %v357
        %v500 = vunpack.c.l.b16 %v358
        %v501 = vunpack.c.l.b16 %v359
        %v502 = vunpack.c.l.b16 %v360
        %v503 = vunpack.c.l.b16 %v361
        %v504 = vunpack.c.l.b16 %v362
        %v505 = vunpack.c.l.b16 %v363
        %v506 = vunpack.c.l.b16 %v364
        %v507 = vunpack.c.l.b16 %v365
        %v508 = vunpack.c.l.b16 %v366
        %v509 = vunpack.c.l.b16 %v367
        %v510 = vunpack.c.l.b16 %v368
        %v511 = vunpack.c.l.b16 %v369
        %v512 = vunpack.c.l.b16 %v370
        %v513 = vunpack.c.l.b16 %v371
        %v514 = vunpack.c.l.b16 %v372
        %v515 = vunpack.c.l.b16 %v373
        %v516 = vunpack.c.l.b16 %v374
        %v517 = vunpack.c.l.b16 %v375
        %v518 = vunpack.c.l.b16 %v376
        %v519 = vunpack.c.l.b16 %v377
        %v520 = vunpack.c.l.b16 %v378
        %v521 = vunpack.c.l.b16 %v379
        %v522 = vunpack.c.l.b16 %v380
        %v523 = vunpack.c.l.b16 %v381
        %v524 = vunpack.c.l.b16 %v382
        %v525 = vunpack.c.l.b16 %v383
        %v526 = vunpack.c.l.b16 %v384
        %v527 = vunpack.c.l.b16 %v385
        %v528 = vunpack.c.l.b16 %v386
        %v529 = vunpack.c.l.b16 %v387
        %v530 = vunpack.c.l.b16 %v388
        %v531 = vunpack.c.l.b16 %v389
        %v532 = vunpack.c.l.b16 %v390
        %v533 = vunpack.c.l.b16 %v391
        %v534 = vunpack.c.l.b16 %v392
        %v535 = vunpack.c.l.b16 %v393
        %v536 = vunpack.c.l.b16 %v394
        %v537 = vunpack.c.l.b16 %v395
        %v538 = vunpack.c.l.b16 %v396
        %v539 = vunpack.c.l.b16 %v397
        %v540 = vunpack.c.l.b16 %v398
        %v541 = vunpack.c.l.b16 %v399
        %v542 = vunpack.c.l.b16 %v400
        %v543 = vunpack.c.l.b16 %v401
        %v544 = vunpack.c.l.b16 %v402
        %v545 = vunpack.c.l.b16 %v403
        %v546 = vunpack.c.l.b16 %v404
        %v547 = vunpack.c.l.b16 %v405
        %v548 = vunpack.c.l.b16 %v406
        %v549 = vunpack.c.l.b16 %v407
        %v550 = vunpack.c.l.b16 %v408
        %v551 = vunpack.c.l.b16 %v409
        %v552 = vunpack.c.l.b16 %v410
        %v553 = vunpack.c.l.b16 %v411
        %v554 = vunpack.c.l.b16 %v412
        %v555 = vunpack.c.l.b16 %v413
        %v556 = vunpack.c.l.b16 %v414
        %v557 = vunpack.c.l.b16 %v415
        %v558 = vunpack.c.l.b16 %v416
        %v559 = vunpack.c.l.b16 %v417
        %v560 = vunpack.c.l.b16 %v418
        %v561 = vunpack.c.l.b16 %v419
        %v562 = vunpack.c.l.b16 %v420
        %v563 = vpack.c.b16 %v500, %v499
        %v564 = vpack.c.b16 %v502, %v501
        %v565 = vpack.c.b16 %v504, %v503
        %v566 = vpack.c.b16 %v506, %v505
        %v567 = vpack.c.b16 %v508, %v507
        %v568 = vpack.c.b16 %v510, %v509
        %v569 = vpack.c.b16 %v512, %v511
        %v570 = vpack.c.b16 %v514, %v513
        %v571 = vpack.c.b16 %v516, %v515
        %v572 = vpack.c.b16 %v518, %v517
        %v573 = vpack.c.b16 %v520, %v519
        %v574 = vpack.c.b16 %v522, %v521
        %v575 = vpack.c.b16 %v524, %v523
        %v576 = vpack.c.b16 %v526, %v525
        %v577 = vpack.c.b16 %v528, %v527
        %v578 = vpack.c.b16 %v530, %v529
        %v579 = vpack.c.b16 %v532, %v531
        %v580 = vpack.c.b16 %v534, %v533
        %v581 = vpack.c.b16 %v536, %v535
        %v582 = vpack.c.b16 %v538, %v537
        %v583 = vpack.c.b16 %v540, %v539
        %v584 = vpack.c.b16 %v542, %v541
        %v585 = vpack.c.b16 %v544, %v543
        %v586 = vpack.c.b16 %v546, %v545
        %v587 = vpack.c.b16 %v548, %v547
        %v588 = vpack.c.b16 %v550, %v549
        %v589 = vpack.c.b16 %v552, %v551
        %v590 = vpack.c.b16 %v554, %v553
        %v591 = vpack.c.b16 %v556, %v555
        %v592 = vpack.c.b16 %v558, %v557
        %v593 = vpack.c.b16 %v560, %v559
        %v594 = vpack.c.b16 %v562, %v561
        %627 = vmatprep.subr.bf16.mxu0 0
        %628 = vmatpush1.bf16.msra.mxu0 %v563
        %629 = vmatprep.subr.bf16.mxu0 0
        %630 = vmatpush1.bf16.msra.mxu0 %v564
        %631 = vmatprep.subr.bf16.mxu0 0
        %632 = vmatpush1.bf16.msra.mxu0 %v565
        %633 = vmatprep.subr.bf16.mxu0 0
        %634 = vmatpush1.bf16.msra.mxu0 %v566
        %635 = vmatprep.subr.bf16.mxu0 0
        %636 = vmatpush1.bf16.msra.mxu0 %v567
        %637 = vmatprep.subr.bf16.mxu0 0
        %638 = vmatpush1.bf16.msra.mxu0 %v568
        %639 = vmatprep.subr.bf16.mxu0 0
        %640 = vmatpush1.bf16.msra.mxu0 %v569
        %641 = vmatprep.subr.bf16.mxu0 0
        %642 = vmatpush1.bf16.msra.mxu0 %v570
        %643 = vmatprep.subr.bf16.mxu0 0
        %644 = vmatpush1.bf16.msra.mxu0 %v571
        %645 = vmatprep.subr.bf16.mxu0 0
        %646 = vmatpush1.bf16.msra.mxu0 %v572
        %647 = vmatprep.subr.bf16.mxu0 0
        %648 = vmatpush1.bf16.msra.mxu0 %v573
        %649 = vmatprep.subr.bf16.mxu0 0
        %650 = vmatpush1.bf16.msra.mxu0 %v574
        %651 = vmatprep.subr.bf16.mxu0 0
        %652 = vmatpush1.bf16.msra.mxu0 %v575
        %653 = vmatprep.subr.bf16.mxu0 0
        %654 = vmatpush1.bf16.msra.mxu0 %v576
        %655 = vmatprep.subr.bf16.mxu0 0
        %656 = vmatpush1.bf16.msra.mxu0 %v577
        %657 = vmatprep.subr.bf16.mxu0 0
        %658 = vmatpush1.bf16.msra.mxu0 %v578
        %659 = vmatprep.mubr.bf16.mxu0 %v428
        %660 = vmatmul.mubr.bf16.gmra.mrb[0].mxu0 %v427
        %v661 = vpop.f32.mrb[0].mxu0
        %v662 = vadd.f32 0.0, %v661
        %v663 = vpop.f32.mrb[0].mxu0
        %v664 = vpop.f32.mrb[0].mxu0
        %v665 = vpop.f32.mrb[0].mxu0
        %666 = vdwg.mxu0
        %667 = vmatprep.subr.bf16.mxu0 0
        %668 = vmatpush1.bf16.msra.mxu0 %v579
        %669 = vmatprep.subr.bf16.mxu0 0
        %670 = vmatpush1.bf16.msra.mxu0 %v580
        %671 = vmatprep.subr.bf16.mxu0 0
        %672 = vmatpush1.bf16.msra.mxu0 %v581
        %673 = vmatprep.subr.bf16.mxu0 0
        %674 = vmatpush1.bf16.msra.mxu0 %v582
        %675 = vmatprep.subr.bf16.mxu0 0
        %676 = vmatpush1.bf16.msra.mxu0 %v583
        %677 = vmatprep.subr.bf16.mxu0 0
        %678 = vmatpush1.bf16.msra.mxu0 %v584
        %679 = vmatprep.subr.bf16.mxu0 0
        %680 = vmatpush1.bf16.msra.mxu0 %v585
        %681 = vmatprep.subr.bf16.mxu0 0
        %682 = vmatpush1.bf16.msra.mxu0 %v586
        %683 = vmatprep.subr.bf16.mxu0 0
        %684 = vmatpush1.bf16.msra.mxu0 %v587
        %685 = vmatprep.subr.bf16.mxu0 0
        %686 = vmatpush1.bf16.msra.mxu0 %v588
        %687 = vmatprep.subr.bf16.mxu0 0
        %688 = vmatpush1.bf16.msra.mxu0 %v589
        %689 = vmatprep.subr.bf16.mxu0 0
        %690 = vmatpush1.bf16.msra.mxu0 %v590
        %691 = vmatprep.subr.bf16.mxu0 0
        %692 = vmatpush1.bf16.msra.mxu0 %v591
        %693 = vmatprep.subr.bf16.mxu0 0
        %694 = vmatpush1.bf16.msra.mxu0 %v592
        %695 = vmatprep.subr.bf16.mxu0 0
        %696 = vmatpush1.bf16.msra.mxu0 %v593
        %697 = vmatprep.subr.bf16.mxu0 0
        %698 = vmatpush1.bf16.msra.mxu0 %v594
        %699 = vmatprep.mubr.bf16.mxu0 %v430
        %700 = vmatmul.mubr.bf16.gmra.mrb[0].mxu0 %v429
        %v701 = vpop.f32.mrb[0].mxu0
        %v702 = vadd.f32 %v662, %v701
        %v703 = vpop.f32.mrb[0].mxu0
        %v704 = vpop.f32.mrb[0].mxu0
        %v705 = vpop.f32.mrb[0].mxu0
        %706 = vdwg.mxu0
        %v707 = vpack.c.bf16 %v702, %v702
        %v708 = vld [vmem:[%s2] sm:$0xf]
        %v709 = vld [vmem:[%s2 + $0x4] sm:$0xf]
        %v710 = vld [vmem:[%s2 + $0x8] sm:$0xf]
        %v711 = vld [vmem:[%s2 + $0xc] sm:$0xf]
        %v712 = vld [vmem:[%s2 + $0x10] sm:$0xf]
        %v713 = vld [vmem:[%s2 + $0x14] sm:$0xf]
        %v714 = vld [vmem:[%s2 + $0x18] sm:$0xf]
        %v715 = vld [vmem:[%s2 + $0x1c] sm:$0xf]
        %v716 = vld [vmem:[%s2 + $0x20] sm:$0xf]
        %v717 = vld [vmem:[%s2 + $0x24] sm:$0xf]
        %v718 = vld [vmem:[%s2 + $0x28] sm:$0xf]
        %v719 = vld [vmem:[%s2 + $0x2c] sm:$0xf]
        %v720 = vld [vmem:[%s2 + $0x30] sm:$0xf]
        %v721 = vld [vmem:[%s2 + $0x34] sm:$0xf]
        %v722 = vld [vmem:[%s2 + $0x38] sm:$0xf]
        %v723 = vld [vmem:[%s2 + $0x3c] sm:$0xf]
        %v740 = vunpack.c.l.b16 %v708
        %v741 = vunpack.c.l.b16 %v709
        %v742 = vunpack.c.l.b16 %v710
        %v743 = vunpack.c.l.b16 %v711
        %v744 = vunpack.c.l.b16 %v712
        %v745 = vunpack.c.l.b16 %v713
        %v746 = vunpack.c.l.b16 %v714
        %v747 = vunpack.c.l.b16 %v715
        %v748 = vunpack.c.l.b16 %v716
        %v749 = vunpack.c.l.b16 %v717
        %v750 = vunpack.c.l.b16 %v718
        %v751 = vunpack.c.l.b16 %v719
        %v752 = vunpack.c.l.b16 %v720
        %v753 = vunpack.c.l.b16 %v721
        %v754 = vunpack.c.l.b16 %v722
        %v755 = vunpack.c.l.b16 %v723
        %v756 = vpack.c.b16 %v741, %v740
        %v757 = vpack.c.b16 %v743, %v742
        %v758 = vpack.c.b16 %v745, %v744
        %v759 = vpack.c.b16 %v747, %v746
        %v760 = vpack.c.b16 %v749, %v748
        %v761 = vpack.c.b16 %v751, %v750
        %v762 = vpack.c.b16 %v753, %v752
        %v763 = vpack.c.b16 %v755, %v754
        %772 = vmatprep.subr.bf16.mxu0 0
        %773 = vmatpush1.bf16.msra.mxu0 %v756
        %774 = vmatprep.subr.bf16.mxu0 0
        %775 = vmatpush1.bf16.msra.mxu0 %v757
        %776 = vmatprep.subr.bf16.mxu0 0
        %777 = vmatpush1.bf16.msra.mxu0 %v758
        %778 = vmatprep.subr.bf16.mxu0 0
        %779 = vmatpush1.bf16.msra.mxu0 %v759
        %780 = vmatprep.subr.bf16.mxu0 0
        %781 = vmatpush1.bf16.msra.mxu0 %v760
        %782 = vmatprep.subr.bf16.mxu0 0
        %783 = vmatpush1.bf16.msra.mxu0 %v761
        %784 = vmatprep.subr.bf16.mxu0 0
        %785 = vmatpush1.bf16.msra.mxu0 %v762
        %786 = vmatprep.subr.bf16.mxu0 0
        %787 = vmatpush1.bf16.msra.mxu0 %v763
        %788 = vmatprep.subr.bf16.mxu0 0
        %789 = vmatpush1.bf16.msra.mxu0 0
        %790 = vmatprep.subr.bf16.mxu0 0
        %791 = vmatpush1.bf16.msra.mxu0 0
        %792 = vmatprep.subr.bf16.mxu0 0
        %793 = vmatpush1.bf16.msra.mxu0 0
        %794 = vmatprep.subr.bf16.mxu0 0
        %795 = vmatpush1.bf16.msra.mxu0 0
        %796 = vmatprep.subr.bf16.mxu0 0
        %797 = vmatpush1.bf16.msra.mxu0 0
        %798 = vmatprep.subr.bf16.mxu0 0
        %799 = vmatpush1.bf16.msra.mxu0 0
        %800 = vmatprep.subr.bf16.mxu0 0
        %801 = vmatpush1.bf16.msra.mxu0 0
        %802 = vmatprep.subr.bf16.mxu0 0
        %803 = vmatpush1.bf16.msra.mxu0 0
        %804 = vmatprep.mubr.bf16.mxu0 0
        %805 = vmatmul.mubr.bf16.gmra.mrb[0].mxu0 %v707
        %v806 = vpop.f32.mrb[0].mxu0
        %v807 = vadd.f32 0.0, %v806
        %v808 = vpop.f32.mrb[0].mxu0
        %v809 = vpop.f32.mrb[0].mxu0
        %v810 = vpop.f32.mrb[0].mxu0
        %811 = vdwg.mxu0
        %v812 = vmax.f32 %v807, 0.0
        %v813 = vpack.c.bf16 %v812, %v812
        %v814 = vld [vmem:[%s3] sm:$0xf]
        %v815 = vld [vmem:[%s3 + $0x4] sm:$0xf]
        %v818 = vunpack.c.l.b16 %v814
        %v819 = vunpack.c.l.b16 %v815
        %v820 = vpack.c.b16 %v819, %v818
        %vm822 = vcmask 130048
        %v824 = vsel %vm822, %v813, 0
        %826 = vmatprep.subr.bf16.mxu0 0
        %827 = vmatpush1.bf16.msra.mxu0 %v820
        %828 = vmatprep.subr.bf16.mxu0 0
        %829 = vmatpush1.bf16.msra.mxu0 0
        %830 = vmatprep.subr.bf16.mxu0 0
        %831 = vmatpush1.bf16.msra.mxu0 0
        %832 = vmatprep.subr.bf16.mxu0 0
        %833 = vmatpush1.bf16.msra.mxu0 0
        %834 = vmatprep.subr.bf16.mxu0 0
        %835 = vmatpush1.bf16.msra.mxu0 0
        %836 = vmatprep.subr.bf16.mxu0 0
        %837 = vmatpush1.bf16.msra.mxu0 0
        %838 = vmatprep.subr.bf16.mxu0 0
        %839 = vmatpush1.bf16.msra.mxu0 0
        %840 = vmatprep.subr.bf16.mxu0 0
        %841 = vmatpush1.bf16.msra.mxu0 0
        %842 = vmatprep.subr.bf16.mxu0 0
        %843 = vmatpush1.bf16.msra.mxu0 0
        %844 = vmatprep.subr.bf16.mxu0 0
        %845 = vmatpush1.bf16.msra.mxu0 0
        %846 = vmatprep.subr.bf16.mxu0 0
        %847 = vmatpush1.bf16.msra.mxu0 0
        %848 = vmatprep.subr.bf16.mxu0 0
        %849 = vmatpush1.bf16.msra.mxu0 0
        %850 = vmatprep.subr.bf16.mxu0 0
        %851 = vmatpush1.bf16.msra.mxu0 0
        %852 = vmatprep.subr.bf16.mxu0 0
        %853 = vmatpush1.bf16.msra.mxu0 0
        %854 = vmatprep.subr.bf16.mxu0 0
        %855 = vmatpush1.bf16.msra.mxu0 0
        %856 = vmatprep.subr.bf16.mxu0 0
        %857 = vmatpush1.bf16.msra.mxu0 0
        %858 = vmatprep.mubr.bf16.mxu0 0
        %859 = vmatmul.mubr.bf16.gmra.mrb[0].mxu0 %v824
        %v860 = vpop.f32.mrb[0].mxu0
        %v861 = vadd.f32 0.0, %v860
        %v862 = vpop.f32.mrb[0].mxu0
        %v863 = vpop.f32.mrb[0].mxu0
        %v864 = vpop.f32.mrb[0].mxu0
        %865 = vdwg.mxu0
        %v866 = vxor.u32 %v861, 2147483648
        %v867 = vmul.f32 %v866, 1.442695
        %v868 = vpow.pop %v867
        %v869 = vadd.f32 %v868, 1.0
        %v870 = vrcp.pop %v869
        %v871 = vmul.f32 1.0, %v870
        %v872 = vmul.f32 %v702, %v871
        %v873 = vpack.c.bf16 %v872, %v872
        %v874 = vld [vmem:[#allocation5] sm:$0xff]
        %v875 = vld [vmem:[#allocation5 + $0x8] sm:$0xff]
        %v876 = vld [vmem:[#allocation5 + $0x10] sm:$0xff]
        %v877 = vld [vmem:[#allocation5 + $0x18] sm:$0xff]
        %v878 = vld [vmem:[#allocation5 + $0x20] sm:$0xff]
        %v879 = vld [vmem:[#allocation5 + $0x28] sm:$0xff]
        %v880 = vld [vmem:[#allocation5 + $0x30] sm:$0xff]
        %v881 = vld [vmem:[#allocation5 + $0x38] sm:$0xff]
        %v882 = vld [vmem:[#allocation5 + $0x40] sm:$0xff]
        %v883 = vld [vmem:[#allocation5 + $0x48] sm:$0xff]
        %v884 = vld [vmem:[#allocation5 + $0x50] sm:$0xff]
        %v885 = vld [vmem:[#allocation5 + $0x58] sm:$0xff]
        %v886 = vld [vmem:[#allocation5 + $0x60] sm:$0xff]
        %v887 = vld [vmem:[#allocation5 + $0x68] sm:$0xff]
        %v888 = vld [vmem:[#allocation5 + $0x70] sm:$0xff]
        %v889 = vld [vmem:[#allocation5 + $0x78] sm:$0xff]
        %v890 = vld [vmem:[%s5] sm:$0x3]
        %v892 = vlaneseq
        %v893 = vshrl.u32 %v892, 7
        %v894 = vsub.s32 0, %v893
        %v895 = vrot.slane %v890, %v894
        %v896 = vlaneseq
        %v897 = vshrl.u32 %v896, 7
        %v898 = vsub.s32 1, %v897
        %v899 = vrot.slane %v890, %v898
        %v918 = vunpack.c.l.b16 %v874
        %v919 = vunpack.c.h.b16 %v874
        %v920 = vunpack.c.l.b16 %v875
        %v921 = vunpack.c.h.b16 %v875
        %v922 = vunpack.c.l.b16 %v876
        %v923 = vunpack.c.h.b16 %v876
        %v924 = vunpack.c.l.b16 %v877
        %v925 = vunpack.c.h.b16 %v877
        %v926 = vunpack.c.l.b16 %v878
        %v927 = vunpack.c.h.b16 %v878
        %v928 = vunpack.c.l.b16 %v879
        %v929 = vunpack.c.h.b16 %v879
        %v930 = vunpack.c.l.b16 %v880
        %v931 = vunpack.c.h.b16 %v880
        %v932 = vunpack.c.l.b16 %v881
        %v933 = vunpack.c.h.b16 %v881
        %v934 = vunpack.c.l.b16 %v882
        %v935 = vunpack.c.h.b16 %v882
        %v936 = vunpack.c.l.b16 %v883
        %v937 = vunpack.c.h.b16 %v883
        %v938 = vunpack.c.l.b16 %v884
        %v939 = vunpack.c.h.b16 %v884
        %v940 = vunpack.c.l.b16 %v885
        %v941 = vunpack.c.h.b16 %v885
        %v942 = vunpack.c.l.b16 %v886
        %v943 = vunpack.c.h.b16 %v886
        %v944 = vunpack.c.l.b16 %v887
        %v945 = vunpack.c.h.b16 %v887
        %v946 = vunpack.c.l.b16 %v888
        %v947 = vunpack.c.h.b16 %v888
        %v948 = vunpack.c.l.b16 %v889
        %v949 = vunpack.c.h.b16 %v889
        %v950 = vpack.c.b16 %v920, %v918
        %v951 = vpack.c.b16 %v921, %v919
        %v952 = vpack.c.b16 %v924, %v922
        %v953 = vpack.c.b16 %v925, %v923
        %v954 = vpack.c.b16 %v928, %v926
        %v955 = vpack.c.b16 %v929, %v927
        %v956 = vpack.c.b16 %v932, %v930
        %v957 = vpack.c.b16 %v933, %v931
        %v958 = vpack.c.b16 %v936, %v934
        %v959 = vpack.c.b16 %v937, %v935
        %v960 = vpack.c.b16 %v940, %v938
        %v961 = vpack.c.b16 %v941, %v939
        %v962 = vpack.c.b16 %v944, %v942
        %v963 = vpack.c.b16 %v945, %v943
        %v964 = vpack.c.b16 %v948, %v946
        %v965 = vpack.c.b16 %v949, %v947
        %982 = vmatprep.subr.bf16.mxu0 %v951
        %983 = vmatpush1.bf16.msra.mxu0 %v950
        %984 = vmatprep.subr.bf16.mxu0 %v953
        %985 = vmatpush1.bf16.msra.mxu0 %v952
        %986 = vmatprep.subr.bf16.mxu0 %v955
        %987 = vmatpush1.bf16.msra.mxu0 %v954
        %988 = vmatprep.subr.bf16.mxu0 %v957
        %989 = vmatpush1.bf16.msra.mxu0 %v956
        %990 = vmatprep.subr.bf16.mxu0 %v959
        %991 = vmatpush1.bf16.msra.mxu0 %v958
        %992 = vmatprep.subr.bf16.mxu0 %v961
        %993 = vmatpush1.bf16.msra.mxu0 %v960
        %994 = vmatprep.subr.bf16.mxu0 %v963
        %995 = vmatpush1.bf16.msra.mxu0 %v962
        %996 = vmatprep.subr.bf16.mxu0 %v965
        %997 = vmatpush1.bf16.msra.mxu0 %v964
        %998 = vmatprep.subr.bf16.mxu0 0
        %999 = vmatpush1.bf16.msra.mxu0 0
        %1000 = vmatprep.subr.bf16.mxu0 0
        %1001 = vmatpush1.bf16.msra.mxu0 0
        %1002 = vmatprep.subr.bf16.mxu0 0
        %1003 = vmatpush1.bf16.msra.mxu0 0
        %1004 = vmatprep.subr.bf16.mxu0 0
        %1005 = vmatpush1.bf16.msra.mxu0 0
        %1006 = vmatprep.subr.bf16.mxu0 0
        %1007 = vmatpush1.bf16.msra.mxu0 0
        %1008 = vmatprep.subr.bf16.mxu0 0
        %1009 = vmatpush1.bf16.msra.mxu0 0
        %1010 = vmatprep.subr.bf16.mxu0 0
        %1011 = vmatpush1.bf16.msra.mxu0 0
        %1012 = vmatprep.subr.bf16.mxu0 0
        %1013 = vmatpush1.bf16.msra.mxu0 0
        %1014 = vmatprep.mubr.bf16.mxu0 0
        %1015 = vmatmul.mubr.bf16.gmra.mrb[0].mxu0 %v873
        %v1016 = vpop.f32.mrb[0].mxu0
        %v1017 = vadd.f32 %v895, %v1016
        %v1018 = vpop.f32.mrb[0].mxu0
        %v1019 = vadd.f32 %v899, %v1018
        %v1020 = vpop.f32.mrb[0].mxu0
        %v1021 = vpop.f32.mrb[0].mxu0
        %1022 = vdwg.mxu0
        %v1023 = vmax.f32 %v1017, 0.0
        %v1024 = vmax.f32 %v1019, 0.0
        %v1025 = vpack.c.bf16 %v1023, %v1023
        %v1026 = vpack.c.bf16 %v1024, %v1024
        %v1027 = vld [vmem:[#allocation7] sm:$0xf]
        %v1028 = vld [vmem:[#allocation7 + $0x4] sm:$0xf]
        %v1029 = vld [vmem:[#allocation7 + $0x8] sm:$0xf]
        %v1030 = vld [vmem:[#allocation7 + $0xc] sm:$0xf]
        %v1031 = vld [vmem:[#allocation7 + $0x10] sm:$0xf]
        %v1032 = vld [vmem:[#allocation7 + $0x14] sm:$0xf]
        %v1033 = vld [vmem:[#allocation7 + $0x18] sm:$0xf]
        %v1034 = vld [vmem:[#allocation7 + $0x1c] sm:$0xf]
        %v1035 = vld [vmem:[#allocation7 + $0x20] sm:$0xf]
        %v1036 = vld [vmem:[#allocation7 + $0x24] sm:$0xf]
        %v1037 = vld [vmem:[#allocation7 + $0x28] sm:$0xf]
        %v1038 = vld [vmem:[#allocation7 + $0x2c] sm:$0xf]
        %v1039 = vld [vmem:[#allocation7 + $0x30] sm:$0xf]
        %v1040 = vld [vmem:[#allocation7 + $0x34] sm:$0xf]
        %v1041 = vld [vmem:[#allocation7 + $0x38] sm:$0xf]
        %v1042 = vld [vmem:[#allocation7 + $0x3c] sm:$0xf]
        %v1043 = vld [vmem:[#allocation7 + $0x40] sm:$0xf]
        %v1044 = vld [vmem:[#allocation7 + $0x44] sm:$0xf]
        %v1045 = vld [vmem:[#allocation7 + $0x48] sm:$0xf]
        %v1046 = vld [vmem:[#allocation7 + $0x4c] sm:$0xf]
        %v1047 = vld [vmem:[#allocation7 + $0x50] sm:$0xf]
        %v1048 = vld [vmem:[#allocation7 + $0x54] sm:$0xf]
        %v1049 = vld [vmem:[#allocation7 + $0x58] sm:$0xf]
        %v1050 = vld [vmem:[#allocation7 + $0x5c] sm:$0xf]
        %v1051 = vld [vmem:[#allocation7 + $0x60] sm:$0xf]
        %v1052 = vld [vmem:[#allocation7 + $0x64] sm:$0xf]
        %v1053 = vld [vmem:[#allocation7 + $0x68] sm:$0xf]
        %v1054 = vld [vmem:[#allocation7 + $0x6c] sm:$0xf]
        %v1055 = vld [vmem:[#allocation7 + $0x70] sm:$0xf]
        %v1056 = vld [vmem:[#allocation7 + $0x74] sm:$0xf]
        %v1057 = vld [vmem:[#allocation7 + $0x78] sm:$0xf]
        %v1058 = vld [vmem:[#allocation7 + $0x7c] sm:$0xf]
        %v1059 = vld [vmem:[%s7] sm:$0x1]
        %v1061 = vlaneseq
        %v1062 = vshrl.u32 %v1061, 7
        %v1063 = vsub.s32 0, %v1062
        %v1064 = vrot.slane %v1059, %v1063
        %v1098 = vunpack.c.l.b16 %v1027
        %v1099 = vunpack.c.l.b16 %v1028
        %v1100 = vunpack.c.l.b16 %v1029
        %v1101 = vunpack.c.l.b16 %v1030
        %v1102 = vunpack.c.l.b16 %v1031
        %v1103 = vunpack.c.l.b16 %v1032
        %v1104 = vunpack.c.l.b16 %v1033
        %v1105 = vunpack.c.l.b16 %v1034
        %v1106 = vunpack.c.l.b16 %v1035
        %v1107 = vunpack.c.l.b16 %v1036
        %v1108 = vunpack.c.l.b16 %v1037
        %v1109 = vunpack.c.l.b16 %v1038
        %v1110 = vunpack.c.l.b16 %v1039
        %v1111 = vunpack.c.l.b16 %v1040
        %v1112 = vunpack.c.l.b16 %v1041
        %v1113 = vunpack.c.l.b16 %v1042
        %v1114 = vunpack.c.l.b16 %v1043
        %v1115 = vunpack.c.l.b16 %v1044
        %v1116 = vunpack.c.l.b16 %v1045
        %v1117 = vunpack.c.l.b16 %v1046
        %v1118 = vunpack.c.l.b16 %v1047
        %v1119 = vunpack.c.l.b16 %v1048
        %v1120 = vunpack.c.l.b16 %v1049
        %v1121 = vunpack.c.l.b16 %v1050
        %v1122 = vunpack.c.l.b16 %v1051
        %v1123 = vunpack.c.l.b16 %v1052
        %v1124 = vunpack.c.l.b16 %v1053
        %v1125 = vunpack.c.l.b16 %v1054
        %v1126 = vunpack.c.l.b16 %v1055
        %v1127 = vunpack.c.l.b16 %v1056
        %v1128 = vunpack.c.l.b16 %v1057
        %v1129 = vunpack.c.l.b16 %v1058
        %v1130 = vpack.c.b16 %v1099, %v1098
        %v1131 = vpack.c.b16 %v1101, %v1100
        %v1132 = vpack.c.b16 %v1103, %v1102
        %v1133 = vpack.c.b16 %v1105, %v1104
        %v1134 = vpack.c.b16 %v1107, %v1106
        %v1135 = vpack.c.b16 %v1109, %v1108
        %v1136 = vpack.c.b16 %v1111, %v1110
        %v1137 = vpack.c.b16 %v1113, %v1112
        %v1138 = vpack.c.b16 %v1115, %v1114
        %v1139 = vpack.c.b16 %v1117, %v1116
        %v1140 = vpack.c.b16 %v1119, %v1118
        %v1141 = vpack.c.b16 %v1121, %v1120
        %v1142 = vpack.c.b16 %v1123, %v1122
        %v1143 = vpack.c.b16 %v1125, %v1124
        %v1144 = vpack.c.b16 %v1127, %v1126
        %v1145 = vpack.c.b16 %v1129, %v1128
        %1162 = vmatprep.subr.bf16.mxu0 0
        %1163 = vmatpush1.bf16.msra.mxu0 %v1130
        %1164 = vmatprep.subr.bf16.mxu0 0
        %1165 = vmatpush1.bf16.msra.mxu0 %v1131
        %1166 = vmatprep.subr.bf16.mxu0 0
        %1167 = vmatpush1.bf16.msra.mxu0 %v1132
        %1168 = vmatprep.subr.bf16.mxu0 0
        %1169 = vmatpush1.bf16.msra.mxu0 %v1133
        %1170 = vmatprep.subr.bf16.mxu0 0
        %1171 = vmatpush1.bf16.msra.mxu0 %v1134
        %1172 = vmatprep.subr.bf16.mxu0 0
        %1173 = vmatpush1.bf16.msra.mxu0 %v1135
        %1174 = vmatprep.subr.bf16.mxu0 0
        %1175 = vmatpush1.bf16.msra.mxu0 %v1136
        %1176 = vmatprep.subr.bf16.mxu0 0
        %1177 = vmatpush1.bf16.msra.mxu0 %v1137
        %1178 = vmatprep.subr.bf16.mxu0 0
        %1179 = vmatpush1.bf16.msra.mxu0 %v1138
        %1180 = vmatprep.subr.bf16.mxu0 0
        %1181 = vmatpush1.bf16.msra.mxu0 %v1139
        %1182 = vmatprep.subr.bf16.mxu0 0
        %1183 = vmatpush1.bf16.msra.mxu0 %v1140
        %1184 = vmatprep.subr.bf16.mxu0 0
        %1185 = vmatpush1.bf16.msra.mxu0 %v1141
        %1186 = vmatprep.subr.bf16.mxu0 0
        %1187 = vmatpush1.bf16.msra.mxu0 %v1142
        %1188 = vmatprep.subr.bf16.mxu0 0
        %1189 = vmatpush1.bf16.msra.mxu0 %v1143
        %1190 = vmatprep.subr.bf16.mxu0 0
        %1191 = vmatpush1.bf16.msra.mxu0 %v1144
        %1192 = vmatprep.subr.bf16.mxu0 0
        %1193 = vmatpush1.bf16.msra.mxu0 %v1145
        %1194 = vmatprep.mubr.bf16.mxu0 %v1026
        %1195 = vmatmul.mubr.bf16.gmra.mrb[0].mxu0 %v1025
        %v1196 = vpop.f32.mrb[0].mxu0
        %v1197 = vadd.f32 %v1064, %v1196
        %v1198 = vpop.f32.mrb[0].mxu0
        %v1199 = vpop.f32.mrb[0].mxu0
        %v1200 = vpop.f32.mrb[0].mxu0
        %1201 = vdwg.mxu0
        %1202 = vst [vmem:[%s352] sm:$0xff] %v1197
        %s1203 = sand.u32 %s207, 1
        %s1204 = scalar_lea.sflag [#allocation4], %s1203
        %s1205 = sand.u32 %s207, 1
        %s1206 = smul.addr %s1205, 8
        %s1207 = scalar_lea.vmem [#allocation8], %s1206
        // Predicated region
        $region65: #{tpu_custom_call.1} parent=51 // pred_check
          %p1208 = pneg %p217
        $region66: #{tpu_custom_call.1} parent=51 // pred_check_branch
          %1210 = sbr.rel (%p1208) target = $region68
        $region67: #{tpu_custom_call.1} parent=51 // pred_region
          %s1212 = ssub.s32 128, 128
          %1213 = vsyncadd %s1204, %s1212
          %s1214 = smul.addr %s26, 128
          %s1215 = scalar_lea.hbm %s8, %s1214
          %s1217 = sshll.u32 %s1207, 4
          %s1218 = int_to_ptr.vmem [resolvable:$true] %s1217
          %1220 = dma.vmem_to_hbm [thread:$0]  %s1218, 128, %s1215, %s1204
        $region68: #{tpu_custom_call.1} parent=51 // pred_fallthru
          _
      $region52: #{tpu_custom_call.1} parent=5 // pred_fallthru
        _
      %p1221 = scmp.le.s32.totalorder 2, %s21
      // Predicated region
      $region69: #{tpu_custom_call.1} parent=5 // pred_check
        %p1222 = pneg %p1221
      $region70: #{tpu_custom_call.1} parent=5 // pred_check_branch
        %1224 = sbr.rel (%p1222) target = $region72
      $region71: #{tpu_custom_call.1} parent=5 // pred_region
        %s1225 = ssub.s32 %s21, 2
        // Predicated region
        $region73: #{tpu_custom_call.1} parent=71 // pred_check
          %p1226 = pneg %p223
        $region74: #{tpu_custom_call.1} parent=71 // pred_check_branch
          %1228 = sbr.rel (%p1226) target = $region76
        $region75: #{tpu_custom_call.1} parent=71 // pred_region
          %s1229 = sand.u32 %s208, 1
          %s1230 = scalar_lea.sflag [#allocation4], %s1229
          %s1231 = sand.u32 %s208, 1
          %s1232 = smul.addr %s1231, 8
          %s1233 = scalar_lea.vmem [#allocation8], %s1232
          %1234 = dma.done %s1230, 128
        $region76: #{tpu_custom_call.1} parent=71 // pred_fallthru
          _
      $region72: #{tpu_custom_call.1} parent=5 // pred_fallthru
        _
    $region6: #{tpu_custom_call.1} parent=1 // loop_footer
      %s25 = sadd.s32 1, %s21
    $region7: #{tpu_custom_call.1} parent=1 // loop_footer_branch
      %20 = sbr.rel target = $region3
    $region8: #{tpu_custom_call.1} parent=1 // loop_exit
      _
    %1235 = vsyncpa [#allocation3], 1
    %s1236 = scalar_lea.sflag [#allocation3], 1
    %1237 = vsyncpa %s1236, 1
    %1238 = vsyncpa [#allocation6], 1
    %1239 = vsyncpa [#allocation4], 1
    %s1240 = scalar_lea.sflag [#allocation4], 1
    %1241 = vsyncpa %s1240, 1

</llo_original>
